<compile_context>
chip_gen: v7x
topology: tpu7x:2x2x1
jax: 0.10.0
libtpu: 0.0.40
codegen_flags: <defaults>
</compile_context>

<pallas_src>
import jax
import jax.numpy as jnp
from jax.experimental import pallas as pl
from jax.experimental.pallas import tpu as pltpu


def patch_embed_kernel(patches_ref, w_ref, pos_ref, out_ref):
    # patches_ref: (TILE_M, K_pad) bf16   w_ref: (K_pad, D) bf16
    # pos_ref:     (TILE_M, D)     f32    out_ref: (TILE_M, D) f32/bf16
    y = jnp.dot(patches_ref[...], w_ref[...],
                preferred_element_type=jnp.float32)          # conv-as-matmul, MXU, f32 acc
    out_ref[...] = (y + pos_ref[...]).astype(out_ref.dtype)  # pos_embed (+ folded conv bias)


def _divisor_tile(m, max_tile, steps=(256, 128, 16, 8)):
    """Largest divisor of m that is <= max_tile and a multiple of one of `steps`."""
    for step in steps:
        t = (max_tile // step) * step
        while t >= step:
            if m % t == 0:
                return t
            t -= step
    return None


def _pick_tile_m(m, batch, max_tile=1024):
    """Row-tile over the (N+1)-long sequence: big, MXU-aligned, (8,128)-legal."""
    if m <= max_tile:
        tile = m                                   # full dim -> always legal
    else:
        tile = _divisor_tile(m, max_tile) or m     # fallback: full dim (single tile)
    # v7x has 2 TensorCores: make sure the 'parallel' grid has >= 2 steps when possible.
    if batch * (m // tile) < 2:
        t2 = _divisor_tile(m, max(8, m // 2))
        if t2 is not None:
            tile = t2
    return tile


def patch_embed_forward(x, conv_w, conv_b, cls_token, pos_embed, patch_size,
                        compute_dtype=jnp.bfloat16, out_dtype=jnp.float32,
                        tile_m=None, pad_k_to=128):
    """x: (B, C, H, W) NCHW float32. Returns (B, N+1, D) in out_dtype."""
    B, C, H, W = x.shape
    p = patch_size
    D = conv_w.shape[0]
    nh, nw = H // p, W // p
    N = nh * nw
    K = C * p * p
    M = N + 1                                        # cls token + N patches

    # Cast BEFORE patch extraction so the materialized (B, N, K) intermediate is
    # written/read at compute_dtype width (half the bytes for bf16).
    x_c = x.astype(compute_dtype)
    patches = (x_c.reshape(B, C, nh, p, nw, p)
                  .transpose(0, 2, 4, 1, 3, 5)
                  .reshape(B, N, K))

    # One pad op: prepend a zero row (cls slot: 0 @ W == 0 exactly) and zero-pad K
    # to a lane-dense multiple (padded columns multiply padded zero weight rows).
    K_pad = K if pad_k_to is None else ((K + pad_k_to - 1) // pad_k_to) * pad_k_to
    patches_ext = jnp.pad(patches, ((0, 0), (1, 0), (0, K_pad - K)))     # (B, M, K_pad)

    # Conv weight (D, C, p, p) -> (K, D), padded rows of zeros, compute dtype.
    w_mat = conv_w.reshape(D, K).T.astype(compute_dtype)
    if K_pad != K:
        w_mat = jnp.pad(w_mat, ((0, K_pad - K), (0, 0)))                 # (K_pad, D)

    # pos table with conv bias folded into patch rows and cls_token folded into row 0.
    pos = pos_embed.reshape(M, D).astype(jnp.float32)
    cls_row = cls_token.reshape(1, D).astype(jnp.float32) + pos[0:1]     # exact f32
    pos_full = jnp.concatenate(
        [cls_row, pos[1:] + conv_b.reshape(1, D).astype(jnp.float32)], axis=0)  # (M, D)

    if tile_m is None:
        tile_m = _pick_tile_m(M, B)
    m_tiles = M // tile_m

    # NOTE: the demo D=32 is below the 128-lane width (masked stores); real ViT
    # configs should keep D a multiple of 128 — do not draw perf conclusions here.
    out = pl.pallas_call(
        patch_embed_kernel,
        out_shape=jax.ShapeDtypeStruct((B, M, D), out_dtype),
        grid_spec=pltpu.PrefetchScalarGridSpec(
            num_scalar_prefetch=0,
            # batch innermost: pos/weight block indices are constant across the
            # inner axis, so their DMAs are skipped after the first step.
            grid=(m_tiles, B),
            in_specs=[
                # size-1 batch dim squeezed -> kernel sees (tile_m, K_pad)
                pl.BlockSpec((None, tile_m, K_pad), lambda m, b: (b, m, 0)),
                # weight is grid-invariant -> fetched once, stays resident
                pl.BlockSpec((K_pad, D), lambda m, b: (0, 0)),
                # pos+bias rows depend only on the M-tile, not on the batch
                pl.BlockSpec((tile_m, D), lambda m, b: (m, 0)),
            ],
            out_specs=pl.BlockSpec((None, tile_m, D), lambda m, b: (b, m, 0)),
        ),
        compiler_params=pltpu.CompilerParams(
            dimension_semantics=("parallel", "parallel"),
            vmem_limit_bytes=64 * 1024 * 1024),
    )(patches_ext, w_mat, pos_full)
    return out                                                           # (B, N+1, D)


def reference_forward(x, conv_w, conv_b, cls_token, pos_embed, patch_size):
    """Pure-JAX f32 reference matching the PyTorch semantics."""
    B, C, H, W = x.shape
    p = patch_size
    D = conv_w.shape[0]
    nh, nw = H // p, W // p
    N = nh * nw
    patches = x.reshape(B, C, nh, p, nw, p).transpose(0, 2, 4, 1, 3, 5)
    patches = patches.reshape(B, N, C * p * p)
    y = patches @ conv_w.reshape(D, -1).T + conv_b                       # (B, N, D)
    cls = jnp.broadcast_to(cls_token.reshape(1, 1, D), (B, 1, D))
    seq = jnp.concatenate([cls, y], axis=1)                              # (B, N+1, D)
    return seq + pos_embed.reshape(1, N + 1, D)                          # pos_drop = identity


if __name__ == "__main__":
    # Small ViT-ish config: B=2, C=4, H=W=16, patch=4 -> N=16 patches, D=32
    B, C, H, W = 2, 4, 16, 16
    patch = 4
    D = 32
    N = (H // patch) * (W // patch)

    key = jax.random.PRNGKey(0)
    kx, kw, kb, kc, kp = jax.random.split(key, 5)
    x = jax.random.normal(kx, (B, C, H, W), dtype=jnp.float32)
    conv_w = jax.random.normal(kw, (D, C, patch, patch), dtype=jnp.float32) * 0.02
    conv_b = jax.random.normal(kb, (D,), dtype=jnp.float32) * 0.02
    cls_token = jax.random.normal(kc, (1, 1, D), dtype=jnp.float32) * 0.02
    pos_embed = jax.random.normal(kp, (1, N + 1, D), dtype=jnp.float32) * 0.02

    out = patch_embed_forward(x, conv_w, conv_b, cls_token, pos_embed, patch)
    out = jax.block_until_ready(out)

    ref = reference_forward(x, conv_w, conv_b, cls_token, pos_embed, patch)
    assert out.shape == (B, N + 1, D), out.shape
    # bf16 matmul operands (f32 accumulation) -> loosened tolerance vs. f32 reference.
    assert jnp.allclose(out, ref, atol=1e-2, rtol=1e-2), float(jnp.max(jnp.abs(out - ref)))

    # cls row = 0 @ W + (cls_token + pos[0]) in f32 -> must be exact.
    assert jnp.allclose(out[:, 0:1, :], ref[:, 0:1, :], atol=1e-6, rtol=1e-6)

    print("KERNEL_OK")
</pallas_src>

<mosaic_0001>
module attributes {stable_mosaic.version = 11 : i64} {
  func.func @patch_embed_kernel(%arg0: i32, %arg1: i32, %arg2: memref<1x17x128xbf16, #tpu.memory_space<vmem>>, %arg3: memref<128x32xbf16, #tpu.memory_space<vmem>>, %arg4: memref<17x32xf32, #tpu.memory_space<vmem>>, %arg5: memref<1x17x32xf32, #tpu.memory_space<vmem>>) attributes {dimension_semantics = [#tpu.dimension_semantics<parallel>, #tpu.dimension_semantics<parallel>], iteration_bounds = array<i64: 1, 2>, scalar_prefetch = 0 : i64, scratch_operands = 0 : i64, tpu.core_type = #tpu.core_type<tc>, window_params = [{transform_indices = @transform_0, window_bounds = array<i64: 1, 17, 128>}, {pipeline_mode = #tpu.pipeline_mode<synchronous>, transform_indices = @transform_1, window_bounds = array<i64: 128, 32>}, {transform_indices = @transform_2, window_bounds = array<i64: 17, 32>}, {transform_indices = @transform_3, window_bounds = array<i64: 1, 17, 32>}]} {
    %c0 = arith.constant 0 : index
    %c0_0 = arith.constant 0 : index
    %c0_1 = arith.constant 0 : index
    %0 = vector.load %arg2[%c0, %c0_0, %c0_1] : memref<1x17x128xbf16, #tpu.memory_space<vmem>>, vector<1x17x128xbf16>
    %1 = vector.shape_cast %0 : vector<1x17x128xbf16> to vector<17x128xbf16>
    %c0_2 = arith.constant 0 : index
    %c0_3 = arith.constant 0 : index
    %2 = vector.load %arg3[%c0_2, %c0_3] : memref<128x32xbf16, #tpu.memory_space<vmem>>, vector<128x32xbf16>
    %cst = arith.constant dense<0.000000e+00> : vector<17x32xf32>
    %3 = tpu.matmul %1, %2, %cst {dimension_numbers = #tpu.dot_dimension_numbers<[1], [0], [0], [1], [0, 0, 1, 1], [], []>} : vector<17x128xbf16>, vector<128x32xbf16>, vector<17x32xf32> -> vector<17x32xf32>
    %c0_4 = arith.constant 0 : index
    %c0_5 = arith.constant 0 : index
    %4 = vector.load %arg4[%c0_4, %c0_5] : memref<17x32xf32, #tpu.memory_space<vmem>>, vector<17x32xf32>
    %5 = arith.addf %3, %4 : vector<17x32xf32>
    %c0_6 = arith.constant 0 : index
    %c0_7 = arith.constant 0 : index
    %c0_8 = arith.constant 0 : index
    %6 = vector.load %arg5[%c0_6, %c0_7, %c0_8] : memref<1x17x32xf32, #tpu.memory_space<vmem>>, vector<1x17x32xf32>
    %7 = vector.shape_cast %6 : vector<1x17x32xf32> to vector<17x32xf32>
    %8 = vector.shape_cast %5 : vector<17x32xf32> to vector<1x17x32xf32>
    tpu.vector_store %arg5[%c0_6, %c0_7, %c0_8], %8 {strides = array<i32>} : memref<1x17x32xf32, #tpu.memory_space<vmem>>, vector<1x17x32xf32>,
    return
  }
  func.func @transform_0(%arg0: i32, %arg1: i32) -> (i32, i32, i32) {
    %c0_i32 = arith.constant 0 : i32
    %c0_i32_0 = arith.constant 0 : i32
    return %arg1, %arg0, %c0_i32 : i32, i32, i32
  }
  func.func @transform_1(%arg0: i32, %arg1: i32) -> (i32, i32) {
    %c0_i32 = arith.constant 0 : i32
    %c0_i32_0 = arith.constant 0 : i32
    %c0_i32_1 = arith.constant 0 : i32
    return %c0_i32, %c0_i32_0 : i32, i32
  }
  func.func @transform_2(%arg0: i32, %arg1: i32) -> (i32, i32) {
    %c0_i32 = arith.constant 0 : i32
    %c0_i32_0 = arith.constant 0 : i32
    return %arg0, %c0_i32 : i32, i32
  }
  func.func @transform_3(%arg0: i32, %arg1: i32) -> (i32, i32, i32) {
    %c0_i32 = arith.constant 0 : i32
    %c0_i32_0 = arith.constant 0 : i32
    return %arg1, %arg0, %c0_i32 : i32, i32, i32
  }
}

</mosaic_0001>

<llo_original>
// kernel: tpu_custom_call.1
$region0: #{tpu_custom_call.1}
  #allocation0 [shape = 'u32[]', space=smem, size = 0x4, offset = 0x4, fixed_abs, tag = 'smem constant byte address 0x4 - core index']
  #allocation1 [shape = 'u32[144,128]{1,0:T(1,128)}', space=vmem, size = 0x12000, scoped, tag = 'internal scratch']
  %s0 = inlined_call_operand.hbm [shape: bf16[2,17,128], index: 0, kind: input, shape index: {}]
  %s1 = inlined_call_operand.hbm [shape: bf16[128,32], index: 1, kind: input, shape index: {}]
  %s2 = inlined_call_operand.hbm [shape: f32[17,32], index: 2, kind: input, shape index: {}]
  %s3 = inlined_call_operand.hbm [shape: f32[2,17,32], index: 3, kind: output, shape index: {}]
  %s4 = sld [smem:[#allocation0]]
  $region57: #{tpu_custom_call.1} parent=0
    _
  %s6 = ssub.s32 1, %s4
  %s7 = scalar_select 0, %s6, %s4
  $region1: #{tpu_custom_call.1} parent=0
    #allocation2 [shape = 'u8[12288]{0}', space=vmem, size = 0x3000, scoped, tag = 'input window, operand 0']
    #allocation3 [shape = 's32[2]{0}', space=sflag, size = 0x8, scoped, tag = 'scoped memory for tpu_custom_call.1']
    #allocation4 [shape = 's32[2]{0}', space=sflag, size = 0x8, scoped, tag = 'scoped memory for tpu_custom_call.1']
    #allocation5 [shape = 'u8[32768]{0}', space=vmem, size = 0x8000, scoped, tag = 'input window, operand 1, single buffered']
    #allocation6 [shape = 's32[1]{0}', space=sflag, size = 0x4, scoped, tag = 'scoped memory for tpu_custom_call.1']
    #allocation7 [shape = 'u8[12288]{0}', space=vmem, size = 0x3000, scoped, tag = 'input window, operand 2, single buffered']
    #allocation8 [shape = 'u8[24576]{0}', space=vmem, size = 0x6000, scoped, tag = 'output window, operand 0']
    %8 = vsyncpa [#allocation3], 0
    %s9 = scalar_lea.sflag [#allocation3], 1
    %10 = vsyncpa %s9, 0
    %11 = vsyncpa [#allocation6], 0
    %12 = vsyncpa [#allocation4], 0
    %s13 = scalar_lea.sflag [#allocation4], 1
    %14 = vsyncpa %s13, 0
    loop: start=0, step=1, limit=4
    $region2: #{tpu_custom_call.1} parent=1 // loop_pre_header
      _
    $region3: #{tpu_custom_call.1} parent=1 // loop_header
      %s16 = sphi 0, %s20
      %p17 = scmp.ge.s32.totalorder %s16, 4
      %s23 = sphi 0, %s35
      %s24 = sphi 0, %s31
      %s25 = sphi 0, %s23
      %s26 = sphi 0, %s24
      %s27 = sphi 0, %s25
      %s28 = sphi 0, %s26
      %s40 = sphi 0, %s42
      %s43 = sphi 0, %s40
      %s44 = sphi 0, %s43
      %s60 = sphi 0, %s44
      %s64 = sphi 0, %s64
      %s66 = sphi 0, %s64
      %s67 = sphi 0, %s66
      %s81 = sphi 0, %s67
      %s87 = sphi 0, %s89
      %s90 = sphi 0, %s87
      %s91 = sphi 0, %s90
      %s107 = sphi 0, %s91
      %s115 = sphi 0, %s117
      %s118 = sphi 0, %s115
      %s119 = sphi 0, %s118
      %s135 = sphi 0, %s119
    $region4: #{tpu_custom_call.1} parent=1 // loop_header_branch
      %19 = sbr.rel (%p17) target = $region8
    $region5: #{tpu_custom_call.1} parent=1 // loop_body
      %s21 = ssub.s32 %s16, 1
      %s22 = ssub.s32 %s16, 2
      %s29 = sadd.s32 1, %s24
      %p30 = scmp.ge.s32.totalorder %s29, 2
      %s31 = scalar_select %p30, 0, %s29
      %s32 = sadd.s32 1, %s23
      %s33 = scalar_select %p30, %s32, %s23
      %p34 = scmp.ge.s32.totalorder %s33, 1
      %s35 = scalar_select %p34, 0, %s33
      %s36 = ssub.s32 %s24, %s31
      %s37 = ssub.s32 %s23, %s35
      %s38 = sor.u32 %s36, %s37
      %p39 = scmp.eq.s32.totalorder %s38, 0
      %s41 = sadd.s32 %s40, 1
      %s42 = scalar_select %p39, %s40, %s41
      %p45 = pneg %p39
      %p46 = scmp.eq.s32.totalorder %s16, 1
      %p47 = por %p45, %p46
      %p48 = scmp.ne.s32.totalorder %s40, %s43
      %p49 = scmp.eq.s32.totalorder %s16, 0
      %p50 = por %p48, %p49
      %p51 = scmp.ne.s32.totalorder %s40, %s43
      %p52 = scmp.eq.s32.totalorder %s21, 1
      %p53 = por %p51, %p52
      %p54 = scmp.ne.s32.totalorder %s43, %s44
      %p55 = scmp.eq.s32.totalorder %s21, 0
      %p56 = por %p54, %p55
      %p57 = scmp.ne.s32.totalorder %s43, %s44
      %p58 = scmp.eq.s32.totalorder %s22, 1
      %p59 = por %p57, %p58
      %p61 = scmp.ne.s32.totalorder %s44, %s60
      %p62 = scmp.eq.s32.totalorder %s22, 0
      %p63 = por %p61, %p62
      %s65 = sadd.s32 %s64, 1
      %p68 = scmp.eq.s32.totalorder %s16, 1
      %p69 = scmp.ne.s32.totalorder %s64, %s66
      %p70 = scmp.eq.s32.totalorder %s16, 0
      %p71 = por %p69, %p70
      %p72 = scmp.ne.s32.totalorder %s64, %s66
      %p73 = scmp.eq.s32.totalorder %s21, 1
      %p74 = por %p72, %p73
      %p75 = scmp.ne.s32.totalorder %s66, %s67
      %p76 = scmp.eq.s32.totalorder %s21, 0
      %p77 = por %p75, %p76
      %p78 = scmp.ne.s32.totalorder %s66, %s67
      %p79 = scmp.eq.s32.totalorder %s22, 1
      %p80 = por %p78, %p79
      %p82 = scmp.ne.s32.totalorder %s67, %s81
      %p83 = scmp.eq.s32.totalorder %s22, 0
      %p84 = por %p82, %p83
      %s85 = ssub.s32 %s23, %s35
      %p86 = scmp.eq.s32.totalorder %s85, 0
      %s88 = sadd.s32 %s87, 1
      %s89 = scalar_select %p86, %s87, %s88
      %p92 = pneg %p86
      %p93 = scmp.eq.s32.totalorder %s16, 1
      %p94 = por %p92, %p93
      %p95 = scmp.ne.s32.totalorder %s87, %s90
      %p96 = scmp.eq.s32.totalorder %s16, 0
      %p97 = por %p95, %p96
      %p98 = scmp.ne.s32.totalorder %s87, %s90
      %p99 = scmp.eq.s32.totalorder %s21, 1
      %p100 = por %p98, %p99
      %p101 = scmp.ne.s32.totalorder %s90, %s91
      %p102 = scmp.eq.s32.totalorder %s21, 0
      %p103 = por %p101, %p102
      %p104 = scmp.ne.s32.totalorder %s90, %s91
      %p105 = scmp.eq.s32.totalorder %s22, 1
      %p106 = por %p104, %p105
      %p108 = scmp.ne.s32.totalorder %s91, %s107
      %p109 = scmp.eq.s32.totalorder %s22, 0
      %p110 = por %p108, %p109
      %s111 = ssub.s32 %s24, %s31
      %s112 = ssub.s32 %s23, %s35
      %s113 = sor.u32 %s111, %s112
      %p114 = scmp.eq.s32.totalorder %s113, 0
      %s116 = sadd.s32 %s115, 1
      %s117 = scalar_select %p114, %s115, %s116
      %p120 = pneg %p114
      %p121 = scmp.eq.s32.totalorder %s16, 1
      %p122 = por %p120, %p121
      %p123 = scmp.ne.s32.totalorder %s115, %s118
      %p124 = scmp.eq.s32.totalorder %s16, 0
      %p125 = por %p123, %p124
      %p126 = scmp.ne.s32.totalorder %s115, %s118
      %p127 = scmp.eq.s32.totalorder %s21, 1
      %p128 = por %p126, %p127
      %p129 = scmp.ne.s32.totalorder %s118, %s119
      %p130 = scmp.eq.s32.totalorder %s21, 0
      %p131 = por %p129, %p130
      %p132 = scmp.ne.s32.totalorder %s118, %s119
      %p133 = scmp.eq.s32.totalorder %s22, 1
      %p134 = por %p132, %p133
      %p136 = scmp.ne.s32.totalorder %s119, %s135
      %p137 = scmp.eq.s32.totalorder %s22, 0
      %p138 = por %p136, %p137
      %p139 = scmp.le.s32.totalorder 1, %s16
      %p140 = scmp.lt.s32.totalorder %s16, 3
      %p141 = pnand %p139, %p140
      %p142 = pneg %p141
      // Predicated region
      $region9: #{tpu_custom_call.1} parent=5 // pred_check
        _
      $region10: #{tpu_custom_call.1} parent=5 // pred_check_branch
        %144 = sbr.rel (%p141) target = $region12
      $region11: #{tpu_custom_call.1} parent=5 // pred_region
        %s145 = ssub.s32 %s16, 1
        // Predicated region
        $region13: #{tpu_custom_call.1} parent=11 // pred_check
          %p146 = pneg %p77
        $region14: #{tpu_custom_call.1} parent=11 // pred_check_branch
          %148 = sbr.rel (%p146) target = $region16
        $region15: #{tpu_custom_call.1} parent=11 // pred_region
          %s150 = ssub.s32 1024, 1024
          %151 = vsyncadd [#allocation6], %s150
          %s152 = sshll.u32 [#allocation5], 4
          %s153 = int_to_ptr.vmem [resolvable:$true] %s152
          %158 = dma.hbm_to_vmem [thread:$0]  %s1, 1024, %s153, [#allocation6], 64, 64, 4
        $region16: #{tpu_custom_call.1} parent=11 // pred_fallthru
          _
        // Predicated region
        $region17: #{tpu_custom_call.1} parent=11 // pred_check
          %p159 = pneg %p103
        $region18: #{tpu_custom_call.1} parent=11 // pred_check_branch
          %161 = sbr.rel (%p159) target = $region20
        $region19: #{tpu_custom_call.1} parent=11 // pred_region
          %s162 = smul.u32 3, %s25
          %s164 = ssub.s32 384, 384
          %165 = vsyncadd [#allocation6], %s164
          %s166 = smul.addr %s162, 128
          %s167 = scalar_lea.hbm %s2, %s166
          %s168 = sshll.u32 [#allocation7], 4
          %s169 = int_to_ptr.vmem [resolvable:$true] %s168
          %174 = dma.hbm_to_vmem [thread:$0]  %s167, 384, %s169, [#allocation6], 128, 128, 8
        $region20: #{tpu_custom_call.1} parent=11 // pred_fallthru
          _
      $region12: #{tpu_custom_call.1} parent=5 // pred_fallthru
        _
      %p175 = scmp.lt.s32.totalorder %s16, 2
      // Predicated region
      $region21: #{tpu_custom_call.1} parent=5 // pred_check
        %p176 = pneg %p175
      $region22: #{tpu_custom_call.1} parent=5 // pred_check_branch
        %178 = sbr.rel (%p176) target = $region24
      $region23: #{tpu_custom_call.1} parent=5 // pred_region
        // Predicated region
        $region25: #{tpu_custom_call.1} parent=23 // pred_check
          %p179 = pneg %p50
        $region26: #{tpu_custom_call.1} parent=23 // pred_check_branch
          %181 = sbr.rel (%p179) target = $region28
        $region27: #{tpu_custom_call.1} parent=23 // pred_region
          %s182 = sand.u32 %s40, 1
          %s183 = scalar_lea.sflag [#allocation3], %s182
          %s184 = sand.u32 %s40, 1
          %s185 = smul.addr %s184, 12
          %s186 = scalar_lea.vmem [#allocation2], %s185
          %s187 = smul.u32 3, %s23
          %s189 = ssub.s32 192, 192
          %190 = vsyncadd %s183, %s189
          %s191 = smul.addr %s24, 3
          %s192 = sadd.s32 %s187, %s191
          %s193 = smul.addr %s192, 64
          %s194 = scalar_lea.hbm %s0, %s193
          %s195 = sshll.u32 %s186, 4
          %s196 = int_to_ptr.vmem [resolvable:$true] %s195
          %201 = dma.hbm_to_vmem [thread:$0]  %s194, 192, %s196, %s183, 64, 64, 4
        $region28: #{tpu_custom_call.1} parent=23 // pred_fallthru
          _
      $region24: #{tpu_custom_call.1} parent=5 // pred_fallthru
        _
      %p202 = scmp.le.s32.totalorder 1, %s16
      %p203 = scmp.lt.s32.totalorder %s16, 3
      %p204 = pnand %p202, %p203
      %p205 = pneg %p204
      // Predicated region
      $region29: #{tpu_custom_call.1} parent=5 // pred_check
        _
      $region30: #{tpu_custom_call.1} parent=5 // pred_check_branch
        %207 = sbr.rel (%p204) target = $region32
      $region31: #{tpu_custom_call.1} parent=5 // pred_region
        %s208 = ssub.s32 %s16, 1
        %s209 = sand.u32 %s43, 1
        %s210 = scalar_lea.sflag [#allocation3], %s209
        %s211 = sand.u32 %s43, 1
        %s212 = smul.addr %s211, 12
        %s213 = scalar_lea.vmem [#allocation2], %s212
        // Predicated region
        $region33: #{tpu_custom_call.1} parent=31 // pred_check
          %p214 = pneg %p56
        $region34: #{tpu_custom_call.1} parent=31 // pred_check_branch
          %216 = sbr.rel (%p214) target = $region36
        $region35: #{tpu_custom_call.1} parent=31 // pred_region
          %217 = dma.done %s210, 192
        $region36: #{tpu_custom_call.1} parent=31 // pred_fallthru
          _
        // Predicated region
        $region37: #{tpu_custom_call.1} parent=31 // pred_check
          %p218 = pneg %p77
        $region38: #{tpu_custom_call.1} parent=31 // pred_check_branch
          %220 = sbr.rel (%p218) target = $region40
        $region39: #{tpu_custom_call.1} parent=31 // pred_region
          %221 = dma.done [#allocation6], 1024
        $region40: #{tpu_custom_call.1} parent=31 // pred_fallthru
          _
        // Predicated region
        $region41: #{tpu_custom_call.1} parent=31 // pred_check
          %p222 = pneg %p103
        $region42: #{tpu_custom_call.1} parent=31 // pred_check_branch
          %224 = sbr.rel (%p222) target = $region44
        $region43: #{tpu_custom_call.1} parent=31 // pred_region
          %225 = dma.done [#allocation6], 384
        $region44: #{tpu_custom_call.1} parent=31 // pred_fallthru
          _
        %s226 = sand.u32 %s43, 1
        %s227 = scalar_lea.sflag [#allocation3], %s226
        %s228 = sand.u32 %s43, 1
        %s229 = smul.addr %s228, 12
        %s230 = scalar_lea.vmem [#allocation2], %s229
        %p231 = pneg %p56
        %p232 = pneg %p53
        %p233 = pneg %p77
        %p234 = pneg %p74
        %p235 = pneg %p103
        %p236 = pneg %p100
        %p237 = pneg %p131
        %p238 = pneg %p128
        %s239 = sand.u32 %s118, 1
        %s240 = scalar_lea.sflag [#allocation4], %s239
        %s241 = sand.u32 %s118, 1
        %s242 = smul.addr %s241, 24
        %s243 = scalar_lea.vmem [#allocation8], %s242
        %s244 = smul.u32 3, %s25
        %s245 = smul.u32 3, %s25
        %s246 = smul.u32 3, %s25
        %v248 = vld [vmem:[%s213] sm:$0xf]
        %v249 = vld [vmem:[%s213 + $0x4] sm:$0xf]
        %v250 = vld [vmem:[%s213 + $0x8] sm:$0x1]
        %v251 = vld [vmem:[#allocation5] sm:$0xf]
        %v252 = vld [vmem:[#allocation5 + $0x4] sm:$0xf]
        %v253 = vld [vmem:[#allocation5 + $0x8] sm:$0xf]
        %v254 = vld [vmem:[#allocation5 + $0xc] sm:$0xf]
        %v255 = vld [vmem:[#allocation5 + $0x10] sm:$0xf]
        %v256 = vld [vmem:[#allocation5 + $0x14] sm:$0xf]
        %v257 = vld [vmem:[#allocation5 + $0x18] sm:$0xf]
        %v258 = vld [vmem:[#allocation5 + $0x1c] sm:$0xf]
        %v259 = vld [vmem:[#allocation5 + $0x20] sm:$0xf]
        %v260 = vld [vmem:[#allocation5 + $0x24] sm:$0xf]
        %v261 = vld [vmem:[#allocation5 + $0x28] sm:$0xf]
        %v262 = vld [vmem:[#allocation5 + $0x2c] sm:$0xf]
        %v263 = vld [vmem:[#allocation5 + $0x30] sm:$0xf]
        %v264 = vld [vmem:[#allocation5 + $0x34] sm:$0xf]
        %v265 = vld [vmem:[#allocation5 + $0x38] sm:$0xf]
        %v266 = vld [vmem:[#allocation5 + $0x3c] sm:$0xf]
        %v267 = vld [vmem:[#allocation7] sm:$0xff]
        %v268 = vld [vmem:[#allocation7 + $0x8] sm:$0xff]
        %v269 = vld [vmem:[#allocation7 + $0x10] sm:$0x1]
        %v273 = vunpack.c.l.b16 %v248
        %v274 = vunpack.c.l.b16 %v249
        %v275 = vunpack.c.l.b16 %v250
        %v276 = vpack.c.b16 %v274, %v273
        %v277 = vpack.c.b16 %v275, %v275
        %v296 = vunpack.c.l.b16 %v251
        %v297 = vunpack.c.l.b16 %v252
        %v298 = vunpack.c.l.b16 %v253
        %v299 = vunpack.c.l.b16 %v254
        %v300 = vunpack.c.l.b16 %v255
        %v301 = vunpack.c.l.b16 %v256
        %v302 = vunpack.c.l.b16 %v257
        %v303 = vunpack.c.l.b16 %v258
        %v304 = vunpack.c.l.b16 %v259
        %v305 = vunpack.c.l.b16 %v260
        %v306 = vunpack.c.l.b16 %v261
        %v307 = vunpack.c.l.b16 %v262
        %v308 = vunpack.c.l.b16 %v263
        %v309 = vunpack.c.l.b16 %v264
        %v310 = vunpack.c.l.b16 %v265
        %v311 = vunpack.c.l.b16 %v266
        %v312 = vpack.c.b16 %v297, %v296
        %v313 = vpack.c.b16 %v299, %v298
        %v314 = vpack.c.b16 %v301, %v300
        %v315 = vpack.c.b16 %v303, %v302
        %v316 = vpack.c.b16 %v305, %v304
        %v317 = vpack.c.b16 %v307, %v306
        %v318 = vpack.c.b16 %v309, %v308
        %v319 = vpack.c.b16 %v311, %v310
        %328 = vmatprep.subr.bf16.mxu0 0
        %329 = vmatpush1.bf16.msra.mxu0 %v312
        %330 = vmatprep.subr.bf16.mxu0 0
        %331 = vmatpush1.bf16.msra.mxu0 %v313
        %332 = vmatprep.subr.bf16.mxu0 0
        %333 = vmatpush1.bf16.msra.mxu0 %v314
        %334 = vmatprep.subr.bf16.mxu0 0
        %335 = vmatpush1.bf16.msra.mxu0 %v315
        %336 = vmatprep.subr.bf16.mxu0 0
        %337 = vmatpush1.bf16.msra.mxu0 %v316
        %338 = vmatprep.subr.bf16.mxu0 0
        %339 = vmatpush1.bf16.msra.mxu0 %v317
        %340 = vmatprep.subr.bf16.mxu0 0
        %341 = vmatpush1.bf16.msra.mxu0 %v318
        %342 = vmatprep.subr.bf16.mxu0 0
        %343 = vmatpush1.bf16.msra.mxu0 %v319
        %344 = vmatprep.subr.bf16.mxu0 0
        %345 = vmatpush1.bf16.msra.mxu0 0
        %346 = vmatprep.subr.bf16.mxu0 0
        %347 = vmatpush1.bf16.msra.mxu0 0
        %348 = vmatprep.subr.bf16.mxu0 0
        %349 = vmatpush1.bf16.msra.mxu0 0
        %350 = vmatprep.subr.bf16.mxu0 0
        %351 = vmatpush1.bf16.msra.mxu0 0
        %352 = vmatprep.subr.bf16.mxu0 0
        %353 = vmatpush1.bf16.msra.mxu0 0
        %354 = vmatprep.subr.bf16.mxu0 0
        %355 = vmatpush1.bf16.msra.mxu0 0
        %356 = vmatprep.subr.bf16.mxu0 0
        %357 = vmatpush1.bf16.msra.mxu0 0
        %358 = vmatprep.subr.bf16.mxu0 0
        %359 = vmatpush1.bf16.msra.mxu0 0
        %360 = vmatprep.mubr.bf16.mxu0 0
        %361 = vmatmul.mubr.bf16.gmra.mrb[0].mxu0 %v276
        %v362 = vpop.f32.mrb[0].mxu0
        %v363 = vadd.f32 %v267, %v362
        %v364 = vpop.f32.mrb[0].mxu0
        %v365 = vpop.f32.mrb[0].mxu0
        %v366 = vadd.f32 %v268, %v365
        %v367 = vpop.f32.mrb[0].mxu0
        %368 = vmatprep.mubr.bf16.mxu0 0
        %369 = vmatmul.mubr.bf16.gmra.mrb[0].mxu0 %v277
        %v370 = vpop.f32.mrb[0].mxu0
        %v371 = vadd.f32 %v269, %v370
        %v372 = vpop.f32.mrb[0].mxu0
        %v373 = vpop.f32.mrb[0].mxu0
        %v374 = vpop.f32.mrb[0].mxu0
        %375 = vdwg.mxu0
        %vm376 = vcmask 261120
        %377 = vst.msk [vmem:[%s243] sm:$0xff] %vm376, %v363
        %378 = vst.msk [vmem:[%s243 + $0x8] sm:$0xff] %vm376, %v366
        %vm379 = vcmask 253952
        %380 = vst.msk [vmem:[%s243 + $0x10] sm:$0x1] %vm379, %v371
        %s381 = sand.u32 %s118, 1
        %s382 = scalar_lea.sflag [#allocation4], %s381
        %s383 = sand.u32 %s118, 1
        %s384 = smul.addr %s383, 24
        %s385 = scalar_lea.vmem [#allocation8], %s384
        // Predicated region
        $region45: #{tpu_custom_call.1} parent=31 // pred_check
          %p386 = pneg %p128
        $region46: #{tpu_custom_call.1} parent=31 // pred_check_branch
          %388 = sbr.rel (%p386) target = $region48
        $region47: #{tpu_custom_call.1} parent=31 // pred_region
          %s389 = smul.u32 3, %s25
          %s391 = ssub.s32 384, 384
          %392 = vsyncadd %s382, %s391
          %s393 = smul.addr %s26, 3
          %s394 = sadd.s32 %s389, %s393
          %s395 = smul.addr %s394, 128
          %s396 = scalar_lea.hbm %s3, %s395
          %s397 = sshll.u32 %s385, 4
          %s398 = int_to_ptr.vmem [resolvable:$true] %s397
          %403 = dma.vmem_to_hbm [thread:$0]  %s398, 384, %s396, %s382, 128, 128, 8
        $region48: #{tpu_custom_call.1} parent=31 // pred_fallthru
          _
      $region32: #{tpu_custom_call.1} parent=5 // pred_fallthru
        _
      %p404 = scmp.le.s32.totalorder 2, %s16
      // Predicated region
      $region49: #{tpu_custom_call.1} parent=5 // pred_check
        %p405 = pneg %p404
      $region50: #{tpu_custom_call.1} parent=5 // pred_check_branch
        %407 = sbr.rel (%p405) target = $region52
      $region51: #{tpu_custom_call.1} parent=5 // pred_region
        %s408 = ssub.s32 %s16, 2
        // Predicated region
        $region53: #{tpu_custom_call.1} parent=51 // pred_check
          %p409 = pneg %p134
        $region54: #{tpu_custom_call.1} parent=51 // pred_check_branch
          %411 = sbr.rel (%p409) target = $region56
        $region55: #{tpu_custom_call.1} parent=51 // pred_region
          %s412 = sand.u32 %s119, 1
          %s413 = scalar_lea.sflag [#allocation4], %s412
          %s414 = sand.u32 %s119, 1
          %s415 = smul.addr %s414, 24
          %s416 = scalar_lea.vmem [#allocation8], %s415
          %417 = dma.done %s413, 384
        $region56: #{tpu_custom_call.1} parent=51 // pred_fallthru
          _
      $region52: #{tpu_custom_call.1} parent=5 // pred_fallthru
        _
    $region6: #{tpu_custom_call.1} parent=1 // loop_footer
      %s20 = sadd.s32 1, %s16
    $region7: #{tpu_custom_call.1} parent=1 // loop_footer_branch
      %15 = sbr.rel target = $region3
    $region8: #{tpu_custom_call.1} parent=1 // loop_exit
      _
    %418 = vsyncpa [#allocation3], 1
    %s419 = scalar_lea.sflag [#allocation3], 1
    %420 = vsyncpa %s419, 1
    %421 = vsyncpa [#allocation6], 1
    %422 = vsyncpa [#allocation4], 1
    %s423 = scalar_lea.sflag [#allocation4], 1
    %424 = vsyncpa %s423, 1

</llo_original>
